<compile_context>
chip_gen: v6e
topology: v6e:2x2x1
jax: 0.10.0
libtpu: 0.0.40
codegen_flags: <defaults>
</compile_context>

<pallas_src>
import functools
import math

import jax
import jax.numpy as jnp
from jax import lax
from jax.experimental import pallas as pl
from jax.experimental.pallas import tpu as pltpu


def _round_up(x: int, m: int) -> int:
    return ((x + m - 1) // m) * m


def _vmem_capacity_bytes() -> int:
    """Physical VMEM of the attached TPU (128 MiB v5e/v6e, 64 MiB v7x)."""
    try:
        cap = int(getattr(pltpu.get_tpu_info(), "vmem_capacity_bytes", 0))
        if cap > 0:
            return cap
    except Exception:
        pass
    return 64 << 20  # conservative fallback = v7x physical VMEM


def _pick_block_b(B, P_pad, D, x_item, vmem_ceiling, target_rows=512):
    """Pick batch rows per grid step.

    * block_b is a multiple of 8 (output-block sublane constraint) that divides
      round_up(B, 8), so the batch is never padded by more than 7 rows.
    * block_b * P_pad targets ~512 flattened rows per projection matmul (two
      full passes of the 256-wide v6e/v7x MXU, four of v5e's 128-wide MXU),
      capped by a generation-aware VMEM budget.
    * Clamped so the grid keeps >= 2 steps whenever the batch allows it, so
      both v7x TensorCores get work on the "parallel" axis.
    """
    B8 = _round_up(B, 8)
    units = B8 // 8
    # VMEM per batch row in one grid step: double-buffered x slab + f32 v / wf
    # temporaries + (lane-padded) score rows.
    per_row = P_pad * D * (2 * x_item + 8) + P_pad * 4 * 128
    budget = max(8 * per_row, (vmem_ceiling * 3) // 5)
    cap = max(8, ((budget // per_row) // 8) * 8)
    want = max(8, _round_up(-(-target_rows // P_pad), 8))
    max_bb = min(cap, want, 8 * units)
    if units >= 2:  # keep >= 2 grid steps for megacore when possible
        max_bb = min(max_bb, 8 * (units // 2))
    best = 1
    for d in range(1, units + 1):
        if units % d == 0 and 8 * d <= max_bb:
            best = d
    return 8 * best


def _aggregator_kernel(x_ref, wkq_ref, hb_ref, kb_ref, wvT_ref, woT_ref,
                       consts_ref, o_ref, *, eps, approx_recip):
    n_rows, D = x_ref.shape
    P_pad, H = kb_ref.shape
    block_b = n_rows // P_pad
    mm = wvT_ref.dtype

    # One VPU cast per block; all MXU matmuls run in `mm` with f32 accumulation.
    x = x_ref[...].astype(mm)

    # ---- attention scores: K projection folded into wkq = Wk^T @ q_head ----
    # (b_k's term is constant across keys within a (row, head) pair and cancels
    #  in the softmax, so it was dropped in the wrapper.)
    s = jnp.dot(x, wkq_ref[...], preferred_element_type=jnp.float32)      # (n_rows, H)
    s3 = s.reshape(block_b, P_pad, H) + kb_ref[...][None, :, :]           # mask padded keys

    # ---- numerically-stable softmax per batch row (divide deferred) ----
    m = jnp.max(s3, axis=1, keepdims=True)                                # (block_b, 1, H)
    e3 = jnp.exp(s3 - m)                                                  # padded keys -> 0
    denom_h = jnp.sum(e3, axis=1)                                         # (block_b, H)

    # ---- V projection (its bias is folded into out_bias in the wrapper) ----
    v = jnp.dot(x, wvT_ref[...], preferred_element_type=jnp.float32)      # (n_rows, D)

    # Broadcast per-head weights onto their dh value columns (tiny 0/1 matmul),
    # then reduce each batch row's keys with an XLU sublane sum (no seg_t matmul).
    wf = jnp.dot(e3.reshape(n_rows, H).astype(mm), hb_ref[...],
                 preferred_element_type=jnp.float32)                      # (n_rows, D)
    ctx_num = jnp.sum((wf * v).reshape(block_b, P_pad, D), axis=1)        # (block_b, D)
    denom = jnp.dot(denom_h.astype(mm), hb_ref[...],
                    preferred_element_type=jnp.float32)                   # (block_b, D)
    ctx = ctx_num * pl.reciprocal(denom, approx=approx_recip)             # deferred divide

    # ---- output projection + folded bias/residual + LayerNorm ----
    # out_bias = b_v @ Wo^T + b_o + query_tok   (precomputed in the wrapper)
    out_bias = consts_ref[0:1, :]
    gamma = consts_ref[1:2, :]
    beta = consts_ref[2:3, :]
    # TODO(synk): attention-weight dropout (p=0.1) only applies in training;
    # eval forward (dropout == identity) is what is implemented here.
    y = jnp.dot(ctx.astype(mm), woT_ref[...],
                preferred_element_type=jnp.float32) + out_bias
    mu = jnp.mean(y, axis=-1, keepdims=True)
    var = jnp.mean(jnp.square(y - mu), axis=-1, keepdims=True)
    y = (y - mu) * lax.rsqrt(var + eps)
    o_ref[...] = (y * gamma + beta).astype(o_ref.dtype)


def patch_aggregator_forward(patches, params, *, num_heads, block_b=None,
                             matmul_dtype=jnp.bfloat16, eps=1e-5):
    """patches: (B, P, D) -> (B, D) float32 (eval-mode attention pooling + LN)."""
    B, P, D = patches.shape
    H = num_heads
    assert D % H == 0, "embed_dim must be divisible by num_heads"
    dh = D // H
    f32 = jnp.float32
    mm = jnp.dtype(matmul_dtype)
    mm_item = mm.itemsize
    x_item = jnp.dtype(patches.dtype).itemsize

    # ---------- hoisted, batch-invariant precomputation (plain JAX, f32) ----------
    qtok = params["query_tok"].astype(f32)                                 # (1, D)
    Wq = params["w_q"].astype(f32)
    Wk = params["w_k"].astype(f32)
    Wv = params["w_v"].astype(f32)
    Wo = params["w_o"].astype(f32)
    b_q = params["b_q"].astype(f32)
    b_v = params["b_v"].astype(f32)
    b_o = params["b_o"].astype(f32)
    gamma = params["ln_gamma"].astype(f32)
    beta = params["ln_beta"].astype(f32)

    q_proj = qtok @ Wq.T + b_q                                             # (1, D)
    scale = 1.0 / math.sqrt(dh)
    head_ids = jnp.arange(D, dtype=jnp.int32) // dh
    head_mask = (head_ids[:, None] ==
                 jnp.arange(H, dtype=jnp.int32)[None, :]).astype(f32)      # (D, H)
    q_head = head_mask * (q_proj[0] * scale)[:, None]                      # (D, H)

    # Fold the entire K projection into one (D, H) matrix: scores = x @ wkq.
    # (b_k's contribution is constant per head across keys -> cancels in softmax.)
    wkq = (Wk.T @ q_head).astype(matmul_dtype)                             # (D, H)
    hb = head_mask.T.astype(matmul_dtype)                                  # (H, D) 0/1 head broadcast
    wvT = Wv.T.astype(matmul_dtype)                                        # (D, D)
    woT = Wo.T.astype(matmul_dtype)                                        # (D, D)
    # Fold b_v through Wo, plus b_o and the raw query-token residual, into one row.
    out_bias = b_v @ Wo.T + b_o + qtok                                     # (1, D)
    consts = jnp.concatenate([out_bias, gamma, beta,
                              jnp.zeros((5, D), f32)], axis=0)             # (8, D)

    # ---------- padding / tiling (generation-aware) ----------
    sublane = max(8, 32 // x_item)
    P_pad = _round_up(P, sublane)
    vmem_cap = _vmem_capacity_bytes()                       # 128 MiB v5e/v6e, 64 MiB v7x
    ceiling = max(32 << 20, vmem_cap - (16 << 20))          # leave compiler scratch headroom

    if block_b is None:
        block_b = _pick_block_b(B, P_pad, D, x_item, ceiling)
    else:
        block_b = max(8, (int(block_b) // 8) * 8)
    Bp = _round_up(B, block_b)
    n_rows = block_b * P_pad

    # Patches stay in their input dtype in HBM (the kernel casts per block);
    # when shapes already line up the reshape below is free (no padded copy).
    x = patches
    if Bp != B or P_pad != P:
        x = jnp.pad(x, ((0, Bp - B), (0, P_pad - P), (0, 0)))
    x_flat = x.reshape(Bp * P_pad, D)

    # Additive key-padding bias broadcast over heads: 0 for real key slots,
    # -1e30 for padded slots (exp() -> 0 after the per-row max subtraction).
    kb = jnp.broadcast_to(
        jnp.where(jnp.arange(P_pad) < P, 0.0, -1e30).astype(f32)[:, None],
        (P_pad, H))

    # ---------- VMEM budget ----------
    block_bytes = (2 * n_rows * D * x_item            # x block (double-buffered)
                   + 4 * D * D * mm_item              # WvT + WoT (double-buffered)
                   + 4 * D * H * mm_item              # wkq + hb
                   + 2 * (P_pad * 128 + 8 * D) * 4    # key bias (lane-padded) + consts
                   + 2 * n_rows * D * 4               # v / wf f32 temporaries
                   + 2 * n_rows * 128 * 4             # score / exp temporaries (lane-padded)
                   + 2 * block_b * D * 4)             # output block
    vmem_limit = int(min(ceiling, max(32 << 20, block_bytes + (8 << 20))))

    kernel = functools.partial(
        _aggregator_kernel, eps=eps,
        approx_recip=(mm != jnp.dtype(jnp.float32)))

    def _const(a):
        nd = a.ndim
        return pl.BlockSpec(a.shape, lambda i: (0,) * nd)

    out = pl.pallas_call(
        kernel,
        out_shape=jax.ShapeDtypeStruct((Bp, D), jnp.float32),
        grid_spec=pltpu.PrefetchScalarGridSpec(
            num_scalar_prefetch=0,
            grid=(Bp // block_b,),
            in_specs=[
                pl.BlockSpec((n_rows, D), lambda i: (i, 0)),   # flattened patches
                _const(wkq), _const(hb), _const(kb),
                _const(wvT), _const(woT), _const(consts),
            ],
            out_specs=pl.BlockSpec((block_b, D), lambda i: (i, 0)),
        ),
        compiler_params=pltpu.CompilerParams(
            dimension_semantics=("parallel",),
            vmem_limit_bytes=vmem_limit),
    )(x_flat, wkq, hb, kb, wvT, woT, consts)

    return out[:B]


def reference_forward(patches, params, *, num_heads):
    """Plain-JAX reference mirroring PyTorch MultiheadAttention (eval) + LayerNorm."""
    B, P, D = patches.shape
    dh = D // num_heads
    qtok = params["query_tok"]                                  # (1, D)
    q = qtok[None, :, :] * jnp.ones((B, 1, 1), jnp.float32)     # (B, 1, D)

    def proj(x, w, b):
        return jnp.einsum("bpd,ed->bpe", x, w) + b

    Q = proj(q, params["w_q"], params["b_q"])
    K = proj(patches, params["w_k"], params["b_k"])
    V = proj(patches, params["w_v"], params["b_v"])

    Qh = Q.reshape(B, 1, num_heads, dh).transpose(0, 2, 1, 3)
    Kh = K.reshape(B, P, num_heads, dh).transpose(0, 2, 1, 3)
    Vh = V.reshape(B, P, num_heads, dh).transpose(0, 2, 1, 3)

    scores = jnp.einsum("bhqd,bhkd->bhqk", Qh, Kh) / math.sqrt(dh)
    attn = jax.nn.softmax(scores, axis=-1)
    ctx = jnp.einsum("bhqk,bhkd->bhqd", attn, Vh)
    ctx = ctx.transpose(0, 2, 1, 3).reshape(B, 1, D)

    pooled = jnp.einsum("bpd,ed->bpe", ctx, params["w_o"]) + params["b_o"]
    y = pooled + q
    mu = jnp.mean(y, axis=-1, keepdims=True)
    var = jnp.mean((y - mu) ** 2, axis=-1, keepdims=True)
    y = (y - mu) / jnp.sqrt(var + 1e-5)
    y = y * params["ln_gamma"] + params["ln_beta"]
    return y[:, 0, :]


def init_params(key, embed_dim):
    ks = jax.random.split(key, 6)
    D = embed_dim
    return {
        "query_tok": (0.02 * jax.random.normal(ks[0], (1, D))).astype(jnp.float32),
        "w_q": (jax.random.normal(ks[1], (D, D)) / math.sqrt(D)).astype(jnp.float32),
        "w_k": (jax.random.normal(ks[2], (D, D)) / math.sqrt(D)).astype(jnp.float32),
        "w_v": (jax.random.normal(ks[3], (D, D)) / math.sqrt(D)).astype(jnp.float32),
        "b_q": jnp.zeros((1, D), jnp.float32),
        "b_k": jnp.zeros((1, D), jnp.float32),
        "b_v": jnp.zeros((1, D), jnp.float32),
        "w_o": (jax.random.normal(ks[4], (D, D)) / math.sqrt(D)).astype(jnp.float32),
        "b_o": (0.01 * jax.random.normal(ks[5], (1, D))).astype(jnp.float32),
        "ln_gamma": jnp.ones((1, D), jnp.float32),
        "ln_beta": jnp.zeros((1, D), jnp.float32),
    }


if __name__ == "__main__":
    B, P, D, H = 16, 8, 32, 8
    key = jax.random.PRNGKey(0)
    k_x, k_p = jax.random.split(key)
    patches = jax.random.normal(k_x, (B, P, D), jnp.float32)
    params = init_params(k_p, D)

    ref = reference_forward(patches, params, num_heads=H)

    # f32 MXU path (block_b=8 -> 2 grid steps), tight check.
    out = patch_aggregator_forward(patches, params, num_heads=H,
                                   block_b=8, matmul_dtype=jnp.float32)
    out = jax.block_until_ready(out)
    assert out.shape == (B, D)
    err = float(jnp.max(jnp.abs(out - ref)))
    assert jnp.allclose(out, ref, atol=2e-4, rtol=2e-4), f"f32 max abs err {err}"

    # Default path: bf16 MXU operands (f32 accumulation / softmax / LayerNorm).
    out_bf16 = patch_aggregator_forward(patches, params, num_heads=H)
    out_bf16 = jax.block_until_ready(out_bf16)
    err_bf = float(jnp.max(jnp.abs(out_bf16 - ref)))
    assert jnp.allclose(out_bf16, ref, atol=1e-1, rtol=1e-1), f"bf16 max abs err {err_bf}"

    # Batch not a multiple of the tile (exercises batch padding + auto block_b).
    out_small = patch_aggregator_forward(patches[:5], params, num_heads=H,
                                         matmul_dtype=jnp.float32)
    out_small = jax.block_until_ready(out_small)
    err_s = float(jnp.max(jnp.abs(out_small - ref[:5])))
    assert jnp.allclose(out_small, ref[:5], atol=2e-4, rtol=2e-4), f"pad max abs err {err_s}"

    print("KERNEL_OK")
</pallas_src>

<mosaic_0001>
module attributes {stable_mosaic.version = 11 : i64} {
  func.func @_aggregator_kernel(%arg0: i32, %arg1: memref<64x32xf32, #tpu.memory_space<vmem>>, %arg2: memref<32x8xf32, #tpu.memory_space<vmem>>, %arg3: memref<8x32xf32, #tpu.memory_space<vmem>>, %arg4: memref<8x8xf32, #tpu.memory_space<vmem>>, %arg5: memref<32x32xf32, #tpu.memory_space<vmem>>, %arg6: memref<32x32xf32, #tpu.memory_space<vmem>>, %arg7: memref<8x32xf32, #tpu.memory_space<vmem>>, %arg8: memref<8x32xf32, #tpu.memory_space<vmem>>) attributes {dimension_semantics = [#tpu.dimension_semantics<parallel>], iteration_bounds = array<i64: 2>, scalar_prefetch = 0 : i64, scratch_operands = 0 : i64, tpu.core_type = #tpu.core_type<tc>, window_params = [{transform_indices = @transform_0, window_bounds = array<i64: 64, 32>}, {pipeline_mode = #tpu.pipeline_mode<synchronous>, transform_indices = @transform_1, window_bounds = array<i64: 32, 8>}, {pipeline_mode = #tpu.pipeline_mode<synchronous>, transform_indices = @transform_2, window_bounds = array<i64: 8, 32>}, {pipeline_mode = #tpu.pipeline_mode<synchronous>, transform_indices = @transform_3, window_bounds = array<i64: 8, 8>}, {pipeline_mode = #tpu.pipeline_mode<synchronous>, transform_indices = @transform_4, window_bounds = array<i64: 32, 32>}, {pipeline_mode = #tpu.pipeline_mode<synchronous>, transform_indices = @transform_5, window_bounds = array<i64: 32, 32>}, {pipeline_mode = #tpu.pipeline_mode<synchronous>, transform_indices = @transform_6, window_bounds = array<i64: 8, 32>}, {transform_indices = @transform_7, window_bounds = array<i64: 8, 32>}]} {
    %c0 = arith.constant 0 : index
    %c0_0 = arith.constant 0 : index
    %0 = vector.load %arg1[%c0, %c0_0] : memref<64x32xf32, #tpu.memory_space<vmem>>, vector<64x32xf32>
    %c0_1 = arith.constant 0 : index
    %c0_2 = arith.constant 0 : index
    %1 = vector.load %arg2[%c0_1, %c0_2] : memref<32x8xf32, #tpu.memory_space<vmem>>, vector<32x8xf32>
    %cst = arith.constant dense<0.000000e+00> : vector<64x8xf32>
    %2 = tpu.matmul %0, %1, %cst {dimension_numbers = #tpu.dot_dimension_numbers<[1], [0], [0], [1], [0, 0, 1, 1], [], []>} : vector<64x32xf32>, vector<32x8xf32>, vector<64x8xf32> -> vector<64x8xf32>
    %3 = vector.shape_cast %2 : vector<64x8xf32> to vector<8x8x8xf32>
    %c0_3 = arith.constant 0 : index
    %c0_4 = arith.constant 0 : index
    %4 = vector.load %arg4[%c0_3, %c0_4] : memref<8x8xf32, #tpu.memory_space<vmem>>, vector<8x8xf32>
    %5 = vector.shape_cast %4 : vector<8x8xf32> to vector<1x8x8xf32>
    %6 = vector.broadcast %5 : vector<1x8x8xf32> to vector<8x8x8xf32>
    %7 = arith.addf %3, %6 : vector<8x8x8xf32>
    %cst_5 = arith.constant dense<0xFF800000> : vector<8x8xf32>
    %8 = vector.multi_reduction <maximumf>, %7, %cst_5 [1] : vector<8x8x8xf32> to vector<8x8xf32>
    %9 = vector.shape_cast %8 : vector<8x8xf32> to vector<8x1x8xf32>
    %10 = vector.broadcast %9 : vector<8x1x8xf32> to vector<8x8x8xf32>
    %11 = arith.subf %7, %10 : vector<8x8x8xf32>
    %12 = math.exp %11 : vector<8x8x8xf32>
    %cst_6 = arith.constant dense<0.000000e+00> : vector<8x8xf32>
    %13 = vector.multi_reduction <add>, %12, %cst_6 [1] : vector<8x8x8xf32> to vector<8x8xf32>
    %c0_7 = arith.constant 0 : index
    %c0_8 = arith.constant 0 : index
    %14 = vector.load %arg5[%c0_7, %c0_8] : memref<32x32xf32, #tpu.memory_space<vmem>>, vector<32x32xf32>
    %cst_9 = arith.constant dense<0.000000e+00> : vector<64x32xf32>
    %15 = tpu.matmul %0, %14, %cst_9 {dimension_numbers = #tpu.dot_dimension_numbers<[1], [0], [0], [1], [0, 0, 1, 1], [], []>} : vector<64x32xf32>, vector<32x32xf32>, vector<64x32xf32> -> vector<64x32xf32>
    %16 = vector.shape_cast %12 : vector<8x8x8xf32> to vector<64x8xf32>
    %c0_10 = arith.constant 0 : index
    %c0_11 = arith.constant 0 : index
    %17 = vector.load %arg3[%c0_10, %c0_11] : memref<8x32xf32, #tpu.memory_space<vmem>>, vector<8x32xf32>
    %cst_12 = arith.constant dense<0.000000e+00> : vector<64x32xf32>
    %18 = tpu.matmul %16, %17, %cst_12 {dimension_numbers = #tpu.dot_dimension_numbers<[1], [0], [0], [1], [0, 0, 1, 1], [], []>} : vector<64x8xf32>, vector<8x32xf32>, vector<64x32xf32> -> vector<64x32xf32>
    %19 = arith.mulf %18, %15 : vector<64x32xf32>
    %20 = vector.shape_cast %19 : vector<64x32xf32> to vector<8x8x32xf32>
    %cst_13 = arith.constant dense<0.000000e+00> : vector<8x32xf32>
    %21 = vector.multi_reduction <add>, %20, %cst_13 [1] : vector<8x8x32xf32> to vector<8x32xf32>
    %c0_14 = arith.constant 0 : index
    %c0_15 = arith.constant 0 : index
    %22 = vector.load %arg3[%c0_14, %c0_15] : memref<8x32xf32, #tpu.memory_space<vmem>>, vector<8x32xf32>
    %cst_16 = arith.constant dense<0.000000e+00> : vector<8x32xf32>
    %23 = tpu.matmul %13, %22, %cst_16 {dimension_numbers = #tpu.dot_dimension_numbers<[1], [0], [0], [1], [0, 0, 1, 1], [], []>} : vector<8x8xf32>, vector<8x32xf32>, vector<8x32xf32> -> vector<8x32xf32>
    %24 = tpu.reciprocal %23 : vector<8x32xf32> -> vector<8x32xf32>
    %25 = arith.mulf %21, %24 : vector<8x32xf32>
    %c0_17 = arith.constant 0 : index
    %c0_18 = arith.constant 0 : index
    %26 = vector.load %arg7[%c0_17, %c0_18] : memref<8x32xf32, #tpu.memory_space<vmem>>, vector<1x32xf32>
    %c1 = arith.constant 1 : index
    %c0_19 = arith.constant 0 : index
    %27 = vector.load %arg7[%c1, %c0_19] : memref<8x32xf32, #tpu.memory_space<vmem>>, vector<1x32xf32>
    %c2 = arith.constant 2 : index
    %c0_20 = arith.constant 0 : index
    %28 = vector.load %arg7[%c2, %c0_20] : memref<8x32xf32, #tpu.memory_space<vmem>>, vector<1x32xf32>
    %c0_21 = arith.constant 0 : index
    %c0_22 = arith.constant 0 : index
    %29 = vector.load %arg6[%c0_21, %c0_22] : memref<32x32xf32, #tpu.memory_space<vmem>>, vector<32x32xf32>
    %cst_23 = arith.constant dense<0.000000e+00> : vector<8x32xf32>
    %30 = tpu.matmul %25, %29, %cst_23 {dimension_numbers = #tpu.dot_dimension_numbers<[1], [0], [0], [1], [0, 0, 1, 1], [], []>} : vector<8x32xf32>, vector<32x32xf32>, vector<8x32xf32> -> vector<8x32xf32>
    %31 = vector.broadcast %26 : vector<1x32xf32> to vector<8x32xf32>
    %32 = arith.addf %30, %31 : vector<8x32xf32>
    %cst_24 = arith.constant dense<0.000000e+00> : vector<8xf32>
    %33 = vector.multi_reduction <add>, %32, %cst_24 [1] : vector<8x32xf32> to vector<8xf32>
    %34 = vector.shape_cast %33 : vector<8xf32> to vector<8x1xf32>
    %cst_25 = arith.constant 3.200000e+01 : f32
    %35 = vector.broadcast %cst_25 : f32 to vector<8x1xf32>
    %36 = arith.divf %34, %35 : vector<8x1xf32>
    %37 = vector.broadcast %36 : vector<8x1xf32> to vector<8x32xf32>
    %38 = arith.subf %32, %37 : vector<8x32xf32>
    %39 = arith.mulf %38, %38 : vector<8x32xf32>
    %cst_26 = arith.constant dense<0.000000e+00> : vector<8xf32>
    %40 = vector.multi_reduction <add>, %39, %cst_26 [1] : vector<8x32xf32> to vector<8xf32>
    %41 = vector.shape_cast %40 : vector<8xf32> to vector<8x1xf32>
    %cst_27 = arith.constant 3.200000e+01 : f32
    %42 = vector.broadcast %cst_27 : f32 to vector<8x1xf32>
    %43 = arith.divf %41, %42 : vector<8x1xf32>
    %44 = vector.broadcast %36 : vector<8x1xf32> to vector<8x32xf32>
    %45 = arith.subf %32, %44 : vector<8x32xf32>
    %cst_28 = arith.constant 9.99999974E-6 : f32
    %46 = vector.broadcast %cst_28 : f32 to vector<8x1xf32>
    %47 = arith.addf %43, %46 : vector<8x1xf32>
    %48 = math.rsqrt %47 : vector<8x1xf32>
    %49 = vector.broadcast %48 : vector<8x1xf32> to vector<8x32xf32>
    %50 = arith.mulf %45, %49 : vector<8x32xf32>
    %51 = vector.broadcast %27 : vector<1x32xf32> to vector<8x32xf32>
    %52 = arith.mulf %50, %51 : vector<8x32xf32>
    %53 = vector.broadcast %28 : vector<1x32xf32> to vector<8x32xf32>
    %54 = arith.addf %52, %53 : vector<8x32xf32>
    %c0_29 = arith.constant 0 : index
    %c0_30 = arith.constant 0 : index
    %55 = vector.load %arg8[%c0_29, %c0_30] : memref<8x32xf32, #tpu.memory_space<vmem>>, vector<8x32xf32>
    tpu.vector_store %arg8[%c0_29, %c0_30], %54 {strides = array<i32>} : memref<8x32xf32, #tpu.memory_space<vmem>>, vector<8x32xf32>,
    return
  }
  func.func @transform_0(%arg0: i32) -> (i32, i32) {
    %c0_i32 = arith.constant 0 : i32
    %c0_i32_0 = arith.constant 0 : i32
    return %arg0, %c0_i32 : i32, i32
  }
  func.func @transform_1(%arg0: i32) -> (i32, i32) {
    %c0_i32 = arith.constant 0 : i32
    %c0_i32_0 = arith.constant 0 : i32
    %c0_i32_1 = arith.constant 0 : i32
    return %c0_i32, %c0_i32_0 : i32, i32
  }
  func.func @transform_2(%arg0: i32) -> (i32, i32) {
    %c0_i32 = arith.constant 0 : i32
    %c0_i32_0 = arith.constant 0 : i32
    %c0_i32_1 = arith.constant 0 : i32
    return %c0_i32, %c0_i32_0 : i32, i32
  }
  func.func @transform_3(%arg0: i32) -> (i32, i32) {
    %c0_i32 = arith.constant 0 : i32
    %c0_i32_0 = arith.constant 0 : i32
    %c0_i32_1 = arith.constant 0 : i32
    return %c0_i32, %c0_i32_0 : i32, i32
  }
  func.func @transform_4(%arg0: i32) -> (i32, i32) {
    %c0_i32 = arith.constant 0 : i32
    %c0_i32_0 = arith.constant 0 : i32
    %c0_i32_1 = arith.constant 0 : i32
    return %c0_i32, %c0_i32_0 : i32, i32
  }
  func.func @transform_5(%arg0: i32) -> (i32, i32) {
    %c0_i32 = arith.constant 0 : i32
    %c0_i32_0 = arith.constant 0 : i32
    %c0_i32_1 = arith.constant 0 : i32
    return %c0_i32, %c0_i32_0 : i32, i32
  }
  func.func @transform_6(%arg0: i32) -> (i32, i32) {
    %c0_i32 = arith.constant 0 : i32
    %c0_i32_0 = arith.constant 0 : i32
    %c0_i32_1 = arith.constant 0 : i32
    return %c0_i32, %c0_i32_0 : i32, i32
  }
  func.func @transform_7(%arg0: i32) -> (i32, i32) {
    %c0_i32 = arith.constant 0 : i32
    %c0_i32_0 = arith.constant 0 : i32
    return %arg0, %c0_i32 : i32, i32
  }
}

</mosaic_0001>

<llo_original>
// kernel: tpu_custom_call.1
$region0: #{tpu_custom_call.1}
  #allocation0 [shape = 'u32[]', space=smem, size = 0x4, offset = 0x4, fixed_abs, tag = 'smem constant byte address 0x4 - core index']
  #allocation1 [shape = 'u32[144,128]{1,0:T(1,128)}', space=vmem, size = 0x12000, scoped, tag = 'internal scratch']
  %s0 = inlined_call_operand.vmem [shape: f32[128,32], index: 0, kind: input, shape index: {}]
  %s1 = inlined_call_operand.vmem [shape: f32[32,8], index: 1, kind: input, shape index: {}]
  %s2 = inlined_call_operand.vmem [shape: f32[8,32], index: 2, kind: input, shape index: {}]
  %s3 = inlined_call_operand.vmem [shape: f32[8,8], index: 3, kind: input, shape index: {}]
  %s4 = inlined_call_operand.vmem [shape: f32[32,32], index: 4, kind: input, shape index: {}]
  %s5 = inlined_call_operand.vmem [shape: f32[32,32], index: 5, kind: input, shape index: {}]
  %s6 = inlined_call_operand.vmem [shape: f32[8,32], index: 6, kind: input, shape index: {}]
  %s7 = inlined_call_operand.hbm [shape: f32[16,32], index: 7, kind: output, shape index: {}]
  %s8 = sld [smem:[#allocation0]]
  $region61: #{tpu_custom_call.1} parent=0
    _
  %s10 = ssub.s32 1, %s8
  %s11 = scalar_select 0, %s10, %s8
  $region1: #{tpu_custom_call.1} parent=0
    #allocation2 [shape = 'u8[8192]{0}', space=vmem, size = 0x2000, scoped, tag = 'output window, operand 0']
    #allocation3 [shape = 's32[2]{0}', space=sflag, size = 0x8, scoped, tag = 'scoped memory for tpu_custom_call.1']
    %12 = vsyncpa [#allocation3], 0
    %s13 = scalar_lea.sflag [#allocation3], 1
    %14 = vsyncpa %s13, 0
    loop: start=0, step=1, limit=4
    $region2: #{tpu_custom_call.1} parent=1 // loop_pre_header
      _
    $region3: #{tpu_custom_call.1} parent=1 // loop_header
      %s16 = sphi 0, %s20
      %p17 = scmp.ge.s32.totalorder %s16, 4
      %s26 = sphi 0, %s28
      %s29 = sphi 0, %s26
      %s30 = sphi 0, %s29
      %s46 = sphi 0, %s30
      %s50 = sphi 0, %s50
      %s52 = sphi 0, %s50
      %s53 = sphi 0, %s52
      %s67 = sphi 0, %s53
      %s71 = sphi 0, %s71
      %s73 = sphi 0, %s71
      %s74 = sphi 0, %s73
      %s88 = sphi 0, %s74
      %s92 = sphi 0, %s92
      %s94 = sphi 0, %s92
      %s95 = sphi 0, %s94
      %s109 = sphi 0, %s95
      %s113 = sphi 0, %s113
      %s115 = sphi 0, %s113
      %s116 = sphi 0, %s115
      %s130 = sphi 0, %s116
      %s134 = sphi 0, %s134
      %s136 = sphi 0, %s134
      %s137 = sphi 0, %s136
      %s151 = sphi 0, %s137
      %s155 = sphi 0, %s155
      %s157 = sphi 0, %s155
      %s158 = sphi 0, %s157
      %s172 = sphi 0, %s158
      %s178 = sphi 0, %s180
      %s181 = sphi 0, %s178
      %s182 = sphi 0, %s181
      %s198 = sphi 0, %s182
    $region4: #{tpu_custom_call.1} parent=1 // loop_header_branch
      %19 = sbr.rel (%p17) target = $region8
    $region5: #{tpu_custom_call.1} parent=1 // loop_body
      %s21 = ssub.s32 %s16, 1
      %s22 = ssub.s32 %s16, 2
      %s23 = sadd.s32 %s16, 1
      %s24 = ssub.s32 %s16, %s23
      %p25 = scmp.eq.s32.totalorder %s24, 0
      %s27 = sadd.s32 %s26, 1
      %s28 = scalar_select %p25, %s26, %s27
      %p31 = pneg %p25
      %p32 = scmp.eq.s32.totalorder %s16, 1
      %p33 = por %p31, %p32
      %p34 = scmp.ne.s32.totalorder %s26, %s29
      %p35 = scmp.eq.s32.totalorder %s16, 0
      %p36 = por %p34, %p35
      %p37 = scmp.ne.s32.totalorder %s26, %s29
      %p38 = scmp.eq.s32.totalorder %s21, 1
      %p39 = por %p37, %p38
      %p40 = scmp.ne.s32.totalorder %s29, %s30
      %p41 = scmp.eq.s32.totalorder %s21, 0
      %p42 = por %p40, %p41
      %p43 = scmp.ne.s32.totalorder %s29, %s30
      %p44 = scmp.eq.s32.totalorder %s22, 1
      %p45 = por %p43, %p44
      %p47 = scmp.ne.s32.totalorder %s30, %s46
      %p48 = scmp.eq.s32.totalorder %s22, 0
      %p49 = por %p47, %p48
      %s51 = sadd.s32 %s50, 1
      %p54 = scmp.eq.s32.totalorder %s16, 1
      %p55 = scmp.ne.s32.totalorder %s50, %s52
      %p56 = scmp.eq.s32.totalorder %s16, 0
      %p57 = por %p55, %p56
      %p58 = scmp.ne.s32.totalorder %s50, %s52
      %p59 = scmp.eq.s32.totalorder %s21, 1
      %p60 = por %p58, %p59
      %p61 = scmp.ne.s32.totalorder %s52, %s53
      %p62 = scmp.eq.s32.totalorder %s21, 0
      %p63 = por %p61, %p62
      %p64 = scmp.ne.s32.totalorder %s52, %s53
      %p65 = scmp.eq.s32.totalorder %s22, 1
      %p66 = por %p64, %p65
      %p68 = scmp.ne.s32.totalorder %s53, %s67
      %p69 = scmp.eq.s32.totalorder %s22, 0
      %p70 = por %p68, %p69
      %s72 = sadd.s32 %s71, 1
      %p75 = scmp.eq.s32.totalorder %s16, 1
      %p76 = scmp.ne.s32.totalorder %s71, %s73
      %p77 = scmp.eq.s32.totalorder %s16, 0
      %p78 = por %p76, %p77
      %p79 = scmp.ne.s32.totalorder %s71, %s73
      %p80 = scmp.eq.s32.totalorder %s21, 1
      %p81 = por %p79, %p80
      %p82 = scmp.ne.s32.totalorder %s73, %s74
      %p83 = scmp.eq.s32.totalorder %s21, 0
      %p84 = por %p82, %p83
      %p85 = scmp.ne.s32.totalorder %s73, %s74
      %p86 = scmp.eq.s32.totalorder %s22, 1
      %p87 = por %p85, %p86
      %p89 = scmp.ne.s32.totalorder %s74, %s88
      %p90 = scmp.eq.s32.totalorder %s22, 0
      %p91 = por %p89, %p90
      %s93 = sadd.s32 %s92, 1
      %p96 = scmp.eq.s32.totalorder %s16, 1
      %p97 = scmp.ne.s32.totalorder %s92, %s94
      %p98 = scmp.eq.s32.totalorder %s16, 0
      %p99 = por %p97, %p98
      %p100 = scmp.ne.s32.totalorder %s92, %s94
      %p101 = scmp.eq.s32.totalorder %s21, 1
      %p102 = por %p100, %p101
      %p103 = scmp.ne.s32.totalorder %s94, %s95
      %p104 = scmp.eq.s32.totalorder %s21, 0
      %p105 = por %p103, %p104
      %p106 = scmp.ne.s32.totalorder %s94, %s95
      %p107 = scmp.eq.s32.totalorder %s22, 1
      %p108 = por %p106, %p107
      %p110 = scmp.ne.s32.totalorder %s95, %s109
      %p111 = scmp.eq.s32.totalorder %s22, 0
      %p112 = por %p110, %p111
      %s114 = sadd.s32 %s113, 1
      %p117 = scmp.eq.s32.totalorder %s16, 1
      %p118 = scmp.ne.s32.totalorder %s113, %s115
      %p119 = scmp.eq.s32.totalorder %s16, 0
      %p120 = por %p118, %p119
      %p121 = scmp.ne.s32.totalorder %s113, %s115
      %p122 = scmp.eq.s32.totalorder %s21, 1
      %p123 = por %p121, %p122
      %p124 = scmp.ne.s32.totalorder %s115, %s116
      %p125 = scmp.eq.s32.totalorder %s21, 0
      %p126 = por %p124, %p125
      %p127 = scmp.ne.s32.totalorder %s115, %s116
      %p128 = scmp.eq.s32.totalorder %s22, 1
      %p129 = por %p127, %p128
      %p131 = scmp.ne.s32.totalorder %s116, %s130
      %p132 = scmp.eq.s32.totalorder %s22, 0
      %p133 = por %p131, %p132
      %s135 = sadd.s32 %s134, 1
      %p138 = scmp.eq.s32.totalorder %s16, 1
      %p139 = scmp.ne.s32.totalorder %s134, %s136
      %p140 = scmp.eq.s32.totalorder %s16, 0
      %p141 = por %p139, %p140
      %p142 = scmp.ne.s32.totalorder %s134, %s136
      %p143 = scmp.eq.s32.totalorder %s21, 1
      %p144 = por %p142, %p143
      %p145 = scmp.ne.s32.totalorder %s136, %s137
      %p146 = scmp.eq.s32.totalorder %s21, 0
      %p147 = por %p145, %p146
      %p148 = scmp.ne.s32.totalorder %s136, %s137
      %p149 = scmp.eq.s32.totalorder %s22, 1
      %p150 = por %p148, %p149
      %p152 = scmp.ne.s32.totalorder %s137, %s151
      %p153 = scmp.eq.s32.totalorder %s22, 0
      %p154 = por %p152, %p153
      %s156 = sadd.s32 %s155, 1
      %p159 = scmp.eq.s32.totalorder %s16, 1
      %p160 = scmp.ne.s32.totalorder %s155, %s157
      %p161 = scmp.eq.s32.totalorder %s16, 0
      %p162 = por %p160, %p161
      %p163 = scmp.ne.s32.totalorder %s155, %s157
      %p164 = scmp.eq.s32.totalorder %s21, 1
      %p165 = por %p163, %p164
      %p166 = scmp.ne.s32.totalorder %s157, %s158
      %p167 = scmp.eq.s32.totalorder %s21, 0
      %p168 = por %p166, %p167
      %p169 = scmp.ne.s32.totalorder %s157, %s158
      %p170 = scmp.eq.s32.totalorder %s22, 1
      %p171 = por %p169, %p170
      %p173 = scmp.ne.s32.totalorder %s158, %s172
      %p174 = scmp.eq.s32.totalorder %s22, 0
      %p175 = por %p173, %p174
      %s176 = ssub.s32 %s16, %s23
      %p177 = scmp.eq.s32.totalorder %s176, 0
      %s179 = sadd.s32 %s178, 1
      %s180 = scalar_select %p177, %s178, %s179
      %p183 = pneg %p177
      %p184 = scmp.eq.s32.totalorder %s16, 1
      %p185 = por %p183, %p184
      %p186 = scmp.ne.s32.totalorder %s178, %s181
      %p187 = scmp.eq.s32.totalorder %s16, 0
      %p188 = por %p186, %p187
      %p189 = scmp.ne.s32.totalorder %s178, %s181
      %p190 = scmp.eq.s32.totalorder %s21, 1
      %p191 = por %p189, %p190
      %p192 = scmp.ne.s32.totalorder %s181, %s182
      %p193 = scmp.eq.s32.totalorder %s21, 0
      %p194 = por %p192, %p193
      %p195 = scmp.ne.s32.totalorder %s181, %s182
      %p196 = scmp.eq.s32.totalorder %s22, 1
      %p197 = por %p195, %p196
      %p199 = scmp.ne.s32.totalorder %s182, %s198
      %p200 = scmp.eq.s32.totalorder %s22, 0
      %p201 = por %p199, %p200
      %p202 = scmp.le.s32.totalorder 1, %s16
      %p203 = scmp.lt.s32.totalorder %s16, 3
      %p204 = pnand %p202, %p203
      %p205 = pneg %p204
      // Predicated region
      $region9: #{tpu_custom_call.1} parent=5 // pred_check
        _
      $region10: #{tpu_custom_call.1} parent=5 // pred_check_branch
        %207 = sbr.rel (%p204) target = $region12
      $region11: #{tpu_custom_call.1} parent=5 // pred_region
        %s208 = ssub.s32 %s16, 1
        // Predicated region
        $region13: #{tpu_custom_call.1} parent=11 // pred_check
          %p209 = pneg %p63
        $region14: #{tpu_custom_call.1} parent=11 // pred_check_branch
          %211 = sbr.rel (%p209) target = $region16
        $region15: #{tpu_custom_call.1} parent=11 // pred_region
          _
        $region16: #{tpu_custom_call.1} parent=11 // pred_fallthru
          _
        // Predicated region
        $region17: #{tpu_custom_call.1} parent=11 // pred_check
          %p212 = pneg %p84
        $region18: #{tpu_custom_call.1} parent=11 // pred_check_branch
          %214 = sbr.rel (%p212) target = $region20
        $region19: #{tpu_custom_call.1} parent=11 // pred_region
          _
        $region20: #{tpu_custom_call.1} parent=11 // pred_fallthru
          _
        // Predicated region
        $region21: #{tpu_custom_call.1} parent=11 // pred_check
          %p215 = pneg %p105
        $region22: #{tpu_custom_call.1} parent=11 // pred_check_branch
          %217 = sbr.rel (%p215) target = $region24
        $region23: #{tpu_custom_call.1} parent=11 // pred_region
          _
        $region24: #{tpu_custom_call.1} parent=11 // pred_fallthru
          _
        // Predicated region
        $region25: #{tpu_custom_call.1} parent=11 // pred_check
          %p218 = pneg %p126
        $region26: #{tpu_custom_call.1} parent=11 // pred_check_branch
          %220 = sbr.rel (%p218) target = $region28
        $region27: #{tpu_custom_call.1} parent=11 // pred_region
          _
        $region28: #{tpu_custom_call.1} parent=11 // pred_fallthru
          _
        // Predicated region
        $region29: #{tpu_custom_call.1} parent=11 // pred_check
          %p221 = pneg %p147
        $region30: #{tpu_custom_call.1} parent=11 // pred_check_branch
          %223 = sbr.rel (%p221) target = $region32
        $region31: #{tpu_custom_call.1} parent=11 // pred_region
          _
        $region32: #{tpu_custom_call.1} parent=11 // pred_fallthru
          _
        // Predicated region
        $region33: #{tpu_custom_call.1} parent=11 // pred_check
          %p224 = pneg %p168
        $region34: #{tpu_custom_call.1} parent=11 // pred_check_branch
          %226 = sbr.rel (%p224) target = $region36
        $region35: #{tpu_custom_call.1} parent=11 // pred_region
          _
        $region36: #{tpu_custom_call.1} parent=11 // pred_fallthru
          _
      $region12: #{tpu_custom_call.1} parent=5 // pred_fallthru
        _
      %p227 = scmp.lt.s32.totalorder %s16, 2
      // Predicated region
      $region37: #{tpu_custom_call.1} parent=5 // pred_check
        %p228 = pneg %p227
      $region38: #{tpu_custom_call.1} parent=5 // pred_check_branch
        %230 = sbr.rel (%p228) target = $region40
      $region39: #{tpu_custom_call.1} parent=5 // pred_region
        // Predicated region
        $region41: #{tpu_custom_call.1} parent=39 // pred_check
          %p231 = pneg %p36
        $region42: #{tpu_custom_call.1} parent=39 // pred_check_branch
          %233 = sbr.rel (%p231) target = $region44
        $region43: #{tpu_custom_call.1} parent=39 // pred_region
          %s234 = smul.u32 8, %s16
          %p235 = scmp.lt.s32.totalorder %s234, 15
          %s236 = scalar_select %p235, %s234, 15
          %s237 = smul.addr %s236, 8
          %s238 = scalar_lea.vmem %s0, %s237
          %s239 = smul.u32 8, %s16
        $region44: #{tpu_custom_call.1} parent=39 // pred_fallthru
          _
      $region40: #{tpu_custom_call.1} parent=5 // pred_fallthru
        _
      %p240 = scmp.le.s32.totalorder 1, %s16
      %p241 = scmp.lt.s32.totalorder %s16, 3
      %p242 = pnand %p240, %p241
      %p243 = pneg %p242
      // Predicated region
      $region45: #{tpu_custom_call.1} parent=5 // pred_check
        _
      $region46: #{tpu_custom_call.1} parent=5 // pred_check_branch
        %245 = sbr.rel (%p242) target = $region48
      $region47: #{tpu_custom_call.1} parent=5 // pred_region
        %s246 = ssub.s32 %s16, 1
        %s247 = smul.u32 8, %s21
        %p248 = scmp.lt.s32.totalorder %s247, 15
        %s249 = scalar_select %p248, %s247, 15
        %s250 = smul.addr %s249, 8
        %s251 = scalar_lea.vmem %s0, %s250
        %p252 = pneg %p42
        %p253 = pneg %p39
        %p254 = pneg %p63
        %p255 = pneg %p60
        %p256 = pneg %p84
        %p257 = pneg %p81
        %p258 = pneg %p105
        %p259 = pneg %p102
        %p260 = pneg %p126
        %p261 = pneg %p123
        %p262 = pneg %p147
        %p263 = pneg %p144
        %p264 = pneg %p168
        %p265 = pneg %p165
        %p266 = pneg %p194
        %p267 = pneg %p191
        %s268 = sand.u32 %s181, 1
        %s269 = scalar_lea.sflag [#allocation3], %s268
        %s270 = sand.u32 %s181, 1
        %s271 = smul.addr %s270, 8
        %s272 = scalar_lea.vmem [#allocation2], %s271
        %s273 = smul.u32 8, %s21
        %p274 = scmp.lt.s32.totalorder %s273, 15
        %s275 = scalar_select %p274, %s273, 15
        %s276 = smul.addr %s275, 8
        %s277 = scalar_lea.vmem %s0, %s276
        %s278 = smul.u32 8, %s21
        %v279 = vld [vmem:[%s277] sm:$0xff]
        %v280 = vld [vmem:[%s277 + $0x8] sm:$0xff]
        %v281 = vld [vmem:[%s277 + $0x10] sm:$0xff]
        %v282 = vld [vmem:[%s277 + $0x18] sm:$0xff]
        %v283 = vld [vmem:[%s277 + $0x20] sm:$0xff]
        %v284 = vld [vmem:[%s277 + $0x28] sm:$0xff]
        %v285 = vld [vmem:[%s277 + $0x30] sm:$0xff]
        %v286 = vld [vmem:[%s277 + $0x38] sm:$0xff]
        %v287 = vld [vmem:[%s1] sm:$0xff]
        %v288 = vld [vmem:[%s1 + $0x8] sm:$0xff]
        %v289 = vld [vmem:[%s1 + $0x10] sm:$0xff]
        %v290 = vld [vmem:[%s1 + $0x18] sm:$0xff]
        %vm291 = vcmask 261120
        %v293 = vsel %vm291, %v279, 0
        %v296 = vsel %vm291, %v280, 0
        %v299 = vsel %vm291, %v281, 0
        %v302 = vsel %vm291, %v282, 0
        %v305 = vsel %vm291, %v283, 0
        %v308 = vsel %vm291, %v284, 0
        %v311 = vsel %vm291, %v285, 0
        %v314 = vsel %vm291, %v286, 0
        %316 = vmatprep.subr.mxu0 0.0
        %317 = vmatpush1.msra.mxu0 0.0
        %318 = vmatprep.subr.mxu0 0.0
        %319 = vmatpush1.msra.mxu0 0.0
        %320 = vmatprep.subr.mxu0 0.0
        %321 = vmatpush1.msra.mxu0 0.0
        %322 = vmatprep.subr.mxu0 0.0
        %323 = vmatpush1.msra.mxu0 0.0
        %324 = vmatprep.subr.mxu0 0.0
        %325 = vmatpush1.msra.mxu0 0.0
        %326 = vmatprep.subr.mxu0 0.0
        %327 = vmatpush1.msra.mxu0 0.0
        %328 = vmatprep.subr.mxu0 0.0
        %329 = vmatpush1.msra.mxu0 0.0
        %330 = vmatprep.subr.mxu0 0.0
        %331 = vmatpush1.msra.mxu0 0.0
        %332 = vmatprep.subr.mxu0 0.0
        %333 = vmatpush1.msra.mxu0 0.0
        %334 = vmatprep.subr.mxu0 0.0
        %335 = vmatpush1.msra.mxu0 0.0
        %336 = vmatprep.subr.mxu0 0.0
        %337 = vmatpush1.msra.mxu0 0.0
        %338 = vmatprep.subr.mxu0 0.0
        %339 = vmatpush1.msra.mxu0 0.0
        %340 = vmatprep.subr.mxu0 0.0
        %341 = vmatpush1.msra.mxu0 %v290
        %342 = vmatprep.subr.mxu0 0.0
        %343 = vmatpush1.msra.mxu0 %v289
        %344 = vmatprep.subr.mxu0 0.0
        %345 = vmatpush1.msra.mxu0 %v288
        %346 = vmatprep.subr.mxu0 0.0
        %347 = vmatpush1.msra.mxu0 %v287
        %348 = vmatprep.subr.mxu0 0.0
        %349 = vmatpush2.msra.mxu0 0.0
        %350 = vmatprep.subr.mxu0 0.0
        %351 = vmatpush2.msra.mxu0 0.0
        %352 = vmatprep.subr.mxu0 0.0
        %353 = vmatpush2.msra.mxu0 0.0
        %354 = vmatprep.subr.mxu0 0.0
        %355 = vmatpush2.msra.mxu0 0.0
        %356 = vmatprep.subr.mxu0 0.0
        %357 = vmatpush2.msra.mxu0 0.0
        %358 = vmatprep.subr.mxu0 0.0
        %359 = vmatpush2.msra.mxu0 0.0
        %360 = vmatprep.subr.mxu0 0.0
        %361 = vmatpush2.msra.mxu0 0.0
        %362 = vmatprep.subr.mxu0 0.0
        %363 = vmatpush2.msra.mxu0 0.0
        %364 = vmatprep.subr.mxu0 0.0
        %365 = vmatpush2.msra.mxu0 0.0
        %366 = vmatprep.subr.mxu0 0.0
        %367 = vmatpush2.msra.mxu0 0.0
        %368 = vmatprep.subr.mxu0 0.0
        %369 = vmatpush2.msra.mxu0 0.0
        %370 = vmatprep.subr.mxu0 0.0
        %371 = vmatpush2.msra.mxu0 0.0
        %372 = vmatprep.subr.mxu0 0.0
        %373 = vmatpush2.msra.mxu0 0.0
        %374 = vmatprep.subr.mxu0 0.0
        %375 = vmatpush2.msra.mxu0 0.0
        %376 = vmatprep.subr.mxu0 0.0
        %377 = vmatpush2.msra.mxu0 0.0
        %378 = vmatprep.subr.mxu0 0.0
        %379 = vmatpush2.msra.mxu0 0.0
        %380 = vmatprep.mubr.f32.mxu0 0.0
        %381 = vmatmul.mubr.f32.gmra.mxu0 %v293
        %v382 = vpop.f32.mrf.mxu0
        %v383 = vadd.f32 0.0, %v382
        %v384 = vpop.f32.mrf.mxu0
        %385 = vmatprep.mubr.f32.mxu0 0.0
        %386 = vmatmul.mubr.f32.gmra.mxu0 %v296
        %v387 = vpop.f32.mrf.mxu0
        %v388 = vadd.f32 0.0, %v387
        %v389 = vpop.f32.mrf.mxu0
        %390 = vmatprep.mubr.f32.mxu0 0.0
        %391 = vmatmul.mubr.f32.gmra.mxu0 %v299
        %v392 = vpop.f32.mrf.mxu0
        %v393 = vadd.f32 0.0, %v392
        %v394 = vpop.f32.mrf.mxu0
        %395 = vmatprep.mubr.f32.mxu0 0.0
        %396 = vmatmul.mubr.f32.gmra.mxu0 %v302
        %v397 = vpop.f32.mrf.mxu0
        %v398 = vadd.f32 0.0, %v397
        %v399 = vpop.f32.mrf.mxu0
        %400 = vmatprep.mubr.f32.mxu0 0.0
        %401 = vmatmul.mubr.f32.gmra.mxu0 %v305
        %v402 = vpop.f32.mrf.mxu0
        %v403 = vadd.f32 0.0, %v402
        %v404 = vpop.f32.mrf.mxu0
        %405 = vmatprep.mubr.f32.mxu0 0.0
        %406 = vmatmul.mubr.f32.gmra.mxu0 %v308
        %v407 = vpop.f32.mrf.mxu0
        %v408 = vadd.f32 0.0, %v407
        %v409 = vpop.f32.mrf.mxu0
        %410 = vmatprep.mubr.f32.mxu0 0.0
        %411 = vmatmul.mubr.f32.gmra.mxu0 %v311
        %v412 = vpop.f32.mrf.mxu0
        %v413 = vadd.f32 0.0, %v412
        %v414 = vpop.f32.mrf.mxu0
        %415 = vmatprep.mubr.f32.mxu0 0.0
        %416 = vmatmul.mubr.f32.gmra.mxu0 %v314
        %v417 = vpop.f32.mrf.mxu0
        %v418 = vadd.f32 0.0, %v417
        %v419 = vpop.f32.mrf.mxu0
        %420 = vdwg.mxu0
        %v421 = vld [vmem:[%s3] sm:$0xff]
        %v422 = vadd.f32 %v383, %v421
        %v423 = vadd.f32 %v388, %v421
        %v424 = vadd.f32 %v393, %v421
        %v425 = vadd.f32 %v398, %v421
        %v426 = vadd.f32 %v403, %v421
        %v427 = vadd.f32 %v408, %v421
        %v428 = vadd.f32 %v413, %v421
        %v429 = vadd.f32 %v418, %v421
        %vm430 = vcmask 64512
        %v431 = vsel %vm430, %v422, -inf
        %v432 = vrot.slane %v431, 4
        %v433 = vmax.f32 %v431, %v432
        %v434 = vrot.slane %v433, 2
        %v435 = vmax.f32 %v433, %v434
        %v436 = vrot.slane %v435, 1
        %v437 = vmax.f32 %v435, %v436
        %v438 = vsel %vm430, %v423, -inf
        %v439 = vrot.slane %v438, 4
        %v440 = vmax.f32 %v438, %v439
        %v441 = vrot.slane %v440, 2
        %v442 = vmax.f32 %v440, %v441
        %v443 = vrot.slane %v442, 1
        %v444 = vmax.f32 %v442, %v443
        %v445 = vsel %vm430, %v424, -inf
        %v446 = vrot.slane %v445, 4
        %v447 = vmax.f32 %v445, %v446
        %v448 = vrot.slane %v447, 2
        %v449 = vmax.f32 %v447, %v448
        %v450 = vrot.slane %v449, 1
        %v451 = vmax.f32 %v449, %v450
        %v452 = vsel %vm430, %v425, -inf
        %v453 = vrot.slane %v452, 4
        %v454 = vmax.f32 %v452, %v453
        %v455 = vrot.slane %v454, 2
        %v456 = vmax.f32 %v454, %v455
        %v457 = vrot.slane %v456, 1
        %v458 = vmax.f32 %v456, %v457
        %v459 = vsel %vm430, %v426, -inf
        %v460 = vrot.slane %v459, 4
        %v461 = vmax.f32 %v459, %v460
        %v462 = vrot.slane %v461, 2
        %v463 = vmax.f32 %v461, %v462
        %v464 = vrot.slane %v463, 1
        %v465 = vmax.f32 %v463, %v464
        %v466 = vsel %vm430, %v427, -inf
        %v467 = vrot.slane %v466, 4
        %v468 = vmax.f32 %v466, %v467
        %v469 = vrot.slane %v468, 2
        %v470 = vmax.f32 %v468, %v469
        %v471 = vrot.slane %v470, 1
        %v472 = vmax.f32 %v470, %v471
        %v473 = vsel %vm430, %v428, -inf
        %v474 = vrot.slane %v473, 4
        %v475 = vmax.f32 %v473, %v474
        %v476 = vrot.slane %v475, 2
        %v477 = vmax.f32 %v475, %v476
        %v478 = vrot.slane %v477, 1
        %v479 = vmax.f32 %v477, %v478
        %v480 = vsel %vm430, %v429, -inf
        %v481 = vrot.slane %v480, 4
        %v482 = vmax.f32 %v480, %v481
        %v483 = vrot.slane %v482, 2
        %v484 = vmax.f32 %v482, %v483
        %v485 = vrot.slane %v484, 1
        %v486 = vmax.f32 %v484, %v485
        %v487 = vsub.f32 %v422, %v437
        %v488 = vsub.f32 %v423, %v444
        %v489 = vsub.f32 %v424, %v451
        %v490 = vsub.f32 %v425, %v458
        %v491 = vsub.f32 %v426, %v465
        %v492 = vsub.f32 %v427, %v472
        %v493 = vsub.f32 %v428, %v479
        %v494 = vsub.f32 %v429, %v486
        %v495 = vmul.f32 %v487, 1.442695
        %v496 = vpow.pop %v495
        %v497 = vmul.f32 %v488, 1.442695
        %v498 = vpow.pop %v497
        %v499 = vmul.f32 %v489, 1.442695
        %v500 = vpow.pop %v499
        %v501 = vmul.f32 %v490, 1.442695
        %v502 = vpow.pop %v501
        %v503 = vmul.f32 %v491, 1.442695
        %v504 = vpow.pop %v503
        %v505 = vmul.f32 %v492, 1.442695
        %v506 = vpow.pop %v505
        %v507 = vmul.f32 %v493, 1.442695
        %v508 = vpow.pop %v507
        %v509 = vmul.f32 %v494, 1.442695
        %v510 = vpow.pop %v509
        %v511 = vsel %vm430, %v496, 0.0
        %v512 = vrot.slane %v511, 4
        %v513 = vadd.f32 %v511, %v512
        %v514 = vrot.slane %v513, 2
        %v515 = vadd.f32 %v513, %v514
        %v516 = vrot.slane %v515, 1
        %v517 = vadd.f32 %v515, %v516
        %v518 = vsel %vm430, %v498, 0.0
        %v519 = vrot.slane %v518, 4
        %v520 = vadd.f32 %v518, %v519
        %v521 = vrot.slane %v520, 2
        %v522 = vadd.f32 %v520, %v521
        %v523 = vrot.slane %v522, 1
        %v524 = vadd.f32 %v522, %v523
        %v525 = vsel %vm430, %v500, 0.0
        %v526 = vrot.slane %v525, 4
        %v527 = vadd.f32 %v525, %v526
        %v528 = vrot.slane %v527, 2
        %v529 = vadd.f32 %v527, %v528
        %v530 = vrot.slane %v529, 1
        %v531 = vadd.f32 %v529, %v530
        %v532 = vsel %vm430, %v502, 0.0
        %v533 = vrot.slane %v532, 4
        %v534 = vadd.f32 %v532, %v533
        %v535 = vrot.slane %v534, 2
        %v536 = vadd.f32 %v534, %v535
        %v537 = vrot.slane %v536, 1
        %v538 = vadd.f32 %v536, %v537
        %v539 = vsel %vm430, %v504, 0.0
        %v540 = vrot.slane %v539, 4
        %v541 = vadd.f32 %v539, %v540
        %v542 = vrot.slane %v541, 2
        %v543 = vadd.f32 %v541, %v542
        %v544 = vrot.slane %v543, 1
        %v545 = vadd.f32 %v543, %v544
        %v546 = vsel %vm430, %v506, 0.0
        %v547 = vrot.slane %v546, 4
        %v548 = vadd.f32 %v546, %v547
        %v549 = vrot.slane %v548, 2
        %v550 = vadd.f32 %v548, %v549
        %v551 = vrot.slane %v550, 1
        %v552 = vadd.f32 %v550, %v551
        %v553 = vsel %vm430, %v508, 0.0
        %v554 = vrot.slane %v553, 4
        %v555 = vadd.f32 %v553, %v554
        %v556 = vrot.slane %v555, 2
        %v557 = vadd.f32 %v555, %v556
        %v558 = vrot.slane %v557, 1
        %v559 = vadd.f32 %v557, %v558
        %v560 = vsel %vm430, %v510, 0.0
        %v561 = vrot.slane %v560, 4
        %v562 = vadd.f32 %v560, %v561
        %v563 = vrot.slane %v562, 2
        %v564 = vadd.f32 %v562, %v563
        %v565 = vrot.slane %v564, 1
        %v566 = vadd.f32 %v564, %v565
        %v567 = vld [vmem:[%s4] sm:$0xff]
        %v568 = vld [vmem:[%s4 + $0x8] sm:$0xff]
        %v569 = vld [vmem:[%s4 + $0x10] sm:$0xff]
        %v570 = vld [vmem:[%s4 + $0x18] sm:$0xff]
        %571 = vmatprep.subr.mxu0 0.0
        %572 = vmatpush1.msra.mxu0 0.0
        %573 = vmatprep.subr.mxu0 0.0
        %574 = vmatpush1.msra.mxu0 0.0
        %575 = vmatprep.subr.mxu0 0.0
        %576 = vmatpush1.msra.mxu0 0.0
        %577 = vmatprep.subr.mxu0 0.0
        %578 = vmatpush1.msra.mxu0 0.0
        %579 = vmatprep.subr.mxu0 0.0
        %580 = vmatpush1.msra.mxu0 0.0
        %581 = vmatprep.subr.mxu0 0.0
        %582 = vmatpush1.msra.mxu0 0.0
        %583 = vmatprep.subr.mxu0 0.0
        %584 = vmatpush1.msra.mxu0 0.0
        %585 = vmatprep.subr.mxu0 0.0
        %586 = vmatpush1.msra.mxu0 0.0
        %587 = vmatprep.subr.mxu0 0.0
        %588 = vmatpush1.msra.mxu0 0.0
        %589 = vmatprep.subr.mxu0 0.0
        %590 = vmatpush1.msra.mxu0 0.0
        %591 = vmatprep.subr.mxu0 0.0
        %592 = vmatpush1.msra.mxu0 0.0
        %593 = vmatprep.subr.mxu0 0.0
        %594 = vmatpush1.msra.mxu0 0.0
        %595 = vmatprep.subr.mxu0 0.0
        %596 = vmatpush1.msra.mxu0 %v570
        %597 = vmatprep.subr.mxu0 0.0
        %598 = vmatpush1.msra.mxu0 %v569
        %599 = vmatprep.subr.mxu0 0.0
        %600 = vmatpush1.msra.mxu0 %v568
        %601 = vmatprep.subr.mxu0 0.0
        %602 = vmatpush1.msra.mxu0 %v567
        %603 = vmatprep.subr.mxu0 0.0
        %604 = vmatpush2.msra.mxu0 0.0
        %605 = vmatprep.subr.mxu0 0.0
        %606 = vmatpush2.msra.mxu0 0.0
        %607 = vmatprep.subr.mxu0 0.0
        %608 = vmatpush2.msra.mxu0 0.0
        %609 = vmatprep.subr.mxu0 0.0
        %610 = vmatpush2.msra.mxu0 0.0
        %611 = vmatprep.subr.mxu0 0.0
        %612 = vmatpush2.msra.mxu0 0.0
        %613 = vmatprep.subr.mxu0 0.0
        %614 = vmatpush2.msra.mxu0 0.0
        %615 = vmatprep.subr.mxu0 0.0
        %616 = vmatpush2.msra.mxu0 0.0
        %617 = vmatprep.subr.mxu0 0.0
        %618 = vmatpush2.msra.mxu0 0.0
        %619 = vmatprep.subr.mxu0 0.0
        %620 = vmatpush2.msra.mxu0 0.0
        %621 = vmatprep.subr.mxu0 0.0
        %622 = vmatpush2.msra.mxu0 0.0
        %623 = vmatprep.subr.mxu0 0.0
        %624 = vmatpush2.msra.mxu0 0.0
        %625 = vmatprep.subr.mxu0 0.0
        %626 = vmatpush2.msra.mxu0 0.0
        %627 = vmatprep.subr.mxu0 0.0
        %628 = vmatpush2.msra.mxu0 0.0
        %629 = vmatprep.subr.mxu0 0.0
        %630 = vmatpush2.msra.mxu0 0.0
        %631 = vmatprep.subr.mxu0 0.0
        %632 = vmatpush2.msra.mxu0 0.0
        %633 = vmatprep.subr.mxu0 0.0
        %634 = vmatpush2.msra.mxu0 0.0
        %635 = vmatprep.mubr.f32.mxu0 0.0
        %636 = vmatmul.mubr.f32.gmra.mxu0 %v293
        %v637 = vpop.f32.mrf.mxu0
        %v638 = vadd.f32 0.0, %v637
        %v639 = vpop.f32.mrf.mxu0
        %640 = vmatprep.mubr.f32.mxu0 0.0
        %641 = vmatmul.mubr.f32.gmra.mxu0 %v296
        %v642 = vpop.f32.mrf.mxu0
        %v643 = vadd.f32 0.0, %v642
        %v644 = vpop.f32.mrf.mxu0
        %645 = vmatprep.mubr.f32.mxu0 0.0
        %646 = vmatmul.mubr.f32.gmra.mxu0 %v299
        %v647 = vpop.f32.mrf.mxu0
        %v648 = vadd.f32 0.0, %v647
        %v649 = vpop.f32.mrf.mxu0
        %650 = vmatprep.mubr.f32.mxu0 0.0
        %651 = vmatmul.mubr.f32.gmra.mxu0 %v302
        %v652 = vpop.f32.mrf.mxu0
        %v653 = vadd.f32 0.0, %v652
        %v654 = vpop.f32.mrf.mxu0
        %655 = vmatprep.mubr.f32.mxu0 0.0
        %656 = vmatmul.mubr.f32.gmra.mxu0 %v305
        %v657 = vpop.f32.mrf.mxu0
        %v658 = vadd.f32 0.0, %v657
        %v659 = vpop.f32.mrf.mxu0
        %660 = vmatprep.mubr.f32.mxu0 0.0
        %661 = vmatmul.mubr.f32.gmra.mxu0 %v308
        %v662 = vpop.f32.mrf.mxu0
        %v663 = vadd.f32 0.0, %v662
        %v664 = vpop.f32.mrf.mxu0
        %665 = vmatprep.mubr.f32.mxu0 0.0
        %666 = vmatmul.mubr.f32.gmra.mxu0 %v311
        %v667 = vpop.f32.mrf.mxu0
        %v668 = vadd.f32 0.0, %v667
        %v669 = vpop.f32.mrf.mxu0
        %670 = vmatprep.mubr.f32.mxu0 0.0
        %671 = vmatmul.mubr.f32.gmra.mxu0 %v314
        %v672 = vpop.f32.mrf.mxu0
        %v673 = vadd.f32 0.0, %v672
        %v674 = vpop.f32.mrf.mxu0
        %675 = vdwg.mxu0
        %v676 = vld [vmem:[%s2] sm:$0xff]
        %v678 = vsel %vm430, %v496, 0
        %v681 = vsel %vm430, %v498, 0
        %v684 = vsel %vm430, %v500, 0
        %v687 = vsel %vm430, %v502, 0
        %v690 = vsel %vm430, %v504, 0
        %v693 = vsel %vm430, %v506, 0
        %v696 = vsel %vm430, %v508, 0
        %v699 = vsel %vm430, %v510, 0
        %701 = vmatprep.subr.mxu0 0.0
        %702 = vmatpush1.msra.mxu0 0.0
        %703 = vmatprep.subr.mxu0 0.0
        %704 = vmatpush1.msra.mxu0 0.0
        %705 = vmatprep.subr.mxu0 0.0
        %706 = vmatpush1.msra.mxu0 0.0
        %707 = vmatprep.subr.mxu0 0.0
        %708 = vmatpush1.msra.mxu0 0.0
        %709 = vmatprep.subr.mxu0 0.0
        %710 = vmatpush1.msra.mxu0 0.0
        %711 = vmatprep.subr.mxu0 0.0
        %712 = vmatpush1.msra.mxu0 0.0
        %713 = vmatprep.subr.mxu0 0.0
        %714 = vmatpush1.msra.mxu0 0.0
        %715 = vmatprep.subr.mxu0 0.0
        %716 = vmatpush1.msra.mxu0 0.0
        %717 = vmatprep.subr.mxu0 0.0
        %718 = vmatpush1.msra.mxu0 0.0
        %719 = vmatprep.subr.mxu0 0.0
        %720 = vmatpush1.msra.mxu0 0.0
        %721 = vmatprep.subr.mxu0 0.0
        %722 = vmatpush1.msra.mxu0 0.0
        %723 = vmatprep.subr.mxu0 0.0
        %724 = vmatpush1.msra.mxu0 0.0
        %725 = vmatprep.subr.mxu0 0.0
        %726 = vmatpush1.msra.mxu0 0.0
        %727 = vmatprep.subr.mxu0 0.0
        %728 = vmatpush1.msra.mxu0 0.0
        %729 = vmatprep.subr.mxu0 0.0
        %730 = vmatpush1.msra.mxu0 0.0
        %731 = vmatprep.subr.mxu0 0.0
        %732 = vmatpush1.msra.mxu0 %v676
        %733 = vmatprep.subr.mxu0 0.0
        %734 = vmatpush2.msra.mxu0 0.0
        %735 = vmatprep.subr.mxu0 0.0
        %736 = vmatpush2.msra.mxu0 0.0
        %737 = vmatprep.subr.mxu0 0.0
        %738 = vmatpush2.msra.mxu0 0.0
        %739 = vmatprep.subr.mxu0 0.0
        %740 = vmatpush2.msra.mxu0 0.0
        %741 = vmatprep.subr.mxu0 0.0
        %742 = vmatpush2.msra.mxu0 0.0
        %743 = vmatprep.subr.mxu0 0.0
        %744 = vmatpush2.msra.mxu0 0.0
        %745 = vmatprep.subr.mxu0 0.0
        %746 = vmatpush2.msra.mxu0 0.0
        %747 = vmatprep.subr.mxu0 0.0
        %748 = vmatpush2.msra.mxu0 0.0
        %749 = vmatprep.subr.mxu0 0.0
        %750 = vmatpush2.msra.mxu0 0.0
        %751 = vmatprep.subr.mxu0 0.0
        %752 = vmatpush2.msra.mxu0 0.0
        %753 = vmatprep.subr.mxu0 0.0
        %754 = vmatpush2.msra.mxu0 0.0
        %755 = vmatprep.subr.mxu0 0.0
        %756 = vmatpush2.msra.mxu0 0.0
        %757 = vmatprep.subr.mxu0 0.0
        %758 = vmatpush2.msra.mxu0 0.0
        %759 = vmatprep.subr.mxu0 0.0
        %760 = vmatpush2.msra.mxu0 0.0
        %761 = vmatprep.subr.mxu0 0.0
        %762 = vmatpush2.msra.mxu0 0.0
        %763 = vmatprep.subr.mxu0 0.0
        %764 = vmatpush2.msra.mxu0 0.0
        %765 = vmatprep.mubr.f32.mxu0 0.0
        %766 = vmatmul.mubr.f32.gmra.mxu0 %v678
        %v767 = vpop.f32.mrf.mxu0
        %v768 = vadd.f32 0.0, %v767
        %v769 = vpop.f32.mrf.mxu0
        %770 = vmatprep.mubr.f32.mxu0 0.0
        %771 = vmatmul.mubr.f32.gmra.mxu0 %v681
        %v772 = vpop.f32.mrf.mxu0
        %v773 = vadd.f32 0.0, %v772
        %v774 = vpop.f32.mrf.mxu0
        %775 = vmatprep.mubr.f32.mxu0 0.0
        %776 = vmatmul.mubr.f32.gmra.mxu0 %v684
        %v777 = vpop.f32.mrf.mxu0
        %v778 = vadd.f32 0.0, %v777
        %v779 = vpop.f32.mrf.mxu0
        %780 = vmatprep.mubr.f32.mxu0 0.0
        %781 = vmatmul.mubr.f32.gmra.mxu0 %v687
        %v782 = vpop.f32.mrf.mxu0
        %v783 = vadd.f32 0.0, %v782
        %v784 = vpop.f32.mrf.mxu0
        %785 = vmatprep.mubr.f32.mxu0 0.0
        %786 = vmatmul.mubr.f32.gmra.mxu0 %v690
        %v787 = vpop.f32.mrf.mxu0
        %v788 = vadd.f32 0.0, %v787
        %v789 = vpop.f32.mrf.mxu0
        %790 = vmatprep.mubr.f32.mxu0 0.0
        %791 = vmatmul.mubr.f32.gmra.mxu0 %v693
        %v792 = vpop.f32.mrf.mxu0
        %v793 = vadd.f32 0.0, %v792
        %v794 = vpop.f32.mrf.mxu0
        %795 = vmatprep.mubr.f32.mxu0 0.0
        %796 = vmatmul.mubr.f32.gmra.mxu0 %v696
        %v797 = vpop.f32.mrf.mxu0
        %v798 = vadd.f32 0.0, %v797
        %v799 = vpop.f32.mrf.mxu0
        %800 = vmatprep.mubr.f32.mxu0 0.0
        %801 = vmatmul.mubr.f32.gmra.mxu0 %v699
        %v802 = vpop.f32.mrf.mxu0
        %v803 = vadd.f32 0.0, %v802
        %v804 = vpop.f32.mrf.mxu0
        %805 = vdwg.mxu0
        %v806 = vmul.f32 %v768, %v638
        %v807 = vmul.f32 %v773, %v643
        %v808 = vmul.f32 %v778, %v648
        %v809 = vmul.f32 %v783, %v653
        %v810 = vmul.f32 %v788, %v658
        %v811 = vmul.f32 %v793, %v663
        %v812 = vmul.f32 %v798, %v668
        %v813 = vmul.f32 %v803, %v673
        %v814 = vsel %vm291, %v806, 0.0
        %v815 = vrot.slane %v814, 4
        %v816 = vadd.f32 %v814, %v815
        %v817 = vrot.slane %v816, 2
        %v818 = vadd.f32 %v816, %v817
        %v819 = vrot.slane %v818, 1
        %v820 = vadd.f32 %v818, %v819
        %v821 = vsel %vm291, %v807, 0.0
        %v822 = vrot.slane %v821, 4
        %v823 = vadd.f32 %v821, %v822
        %v824 = vrot.slane %v823, 2
        %v825 = vadd.f32 %v823, %v824
        %v826 = vrot.slane %v825, 1
        %v827 = vadd.f32 %v825, %v826
        %v828 = vsel %vm291, %v808, 0.0
        %v829 = vrot.slane %v828, 4
        %v830 = vadd.f32 %v828, %v829
        %v831 = vrot.slane %v830, 2
        %v832 = vadd.f32 %v830, %v831
        %v833 = vrot.slane %v832, 1
        %v834 = vadd.f32 %v832, %v833
        %v835 = vsel %vm291, %v809, 0.0
        %v836 = vrot.slane %v835, 4
        %v837 = vadd.f32 %v835, %v836
        %v838 = vrot.slane %v837, 2
        %v839 = vadd.f32 %v837, %v838
        %v840 = vrot.slane %v839, 1
        %v841 = vadd.f32 %v839, %v840
        %v842 = vsel %vm291, %v810, 0.0
        %v843 = vrot.slane %v842, 4
        %v844 = vadd.f32 %v842, %v843
        %v845 = vrot.slane %v844, 2
        %v846 = vadd.f32 %v844, %v845
        %v847 = vrot.slane %v846, 1
        %v848 = vadd.f32 %v846, %v847
        %v849 = vsel %vm291, %v811, 0.0
        %v850 = vrot.slane %v849, 4
        %v851 = vadd.f32 %v849, %v850
        %v852 = vrot.slane %v851, 2
        %v853 = vadd.f32 %v851, %v852
        %v854 = vrot.slane %v853, 1
        %v855 = vadd.f32 %v853, %v854
        %v856 = vsel %vm291, %v812, 0.0
        %v857 = vrot.slane %v856, 4
        %v858 = vadd.f32 %v856, %v857
        %v859 = vrot.slane %v858, 2
        %v860 = vadd.f32 %v858, %v859
        %v861 = vrot.slane %v860, 1
        %v862 = vadd.f32 %v860, %v861
        %v863 = vsel %vm291, %v813, 0.0
        %v864 = vrot.slane %v863, 4
        %v865 = vadd.f32 %v863, %v864
        %v866 = vrot.slane %v865, 2
        %v867 = vadd.f32 %v865, %v866
        %v868 = vrot.slane %v867, 1
        %v869 = vadd.f32 %v867, %v868
        %vm878 = vcmask 1041409
        %v879 = vsel %vm878, %v524, %v517
        %vm880 = vcmask 1042434
        %v881 = vsel %vm880, %v531, %v879
        %vm882 = vcmask 1043459
        %v883 = vsel %vm882, %v538, %v881
        %vm884 = vcmask 1044484
        %v885 = vsel %vm884, %v545, %v883
        %vm886 = vcmask 1045509
        %v887 = vsel %vm886, %v552, %v885
        %vm888 = vcmask 1046534
        %v889 = vsel %vm888, %v559, %v887
        %vm890 = vcmask 1047559
        %v891 = vsel %vm890, %v566, %v889
        %v892 = vsel %vm430, %v891, 0
        %894 = vmatprep.subr.mxu0 0.0
        %895 = vmatpush1.msra.mxu0 0.0
        %896 = vmatprep.subr.mxu0 0.0
        %897 = vmatpush1.msra.mxu0 0.0
        %898 = vmatprep.subr.mxu0 0.0
        %899 = vmatpush1.msra.mxu0 0.0
        %900 = vmatprep.subr.mxu0 0.0
        %901 = vmatpush1.msra.mxu0 0.0
        %902 = vmatprep.subr.mxu0 0.0
        %903 = vmatpush1.msra.mxu0 0.0
        %904 = vmatprep.subr.mxu0 0.0
        %905 = vmatpush1.msra.mxu0 0.0
        %906 = vmatprep.subr.mxu0 0.0
        %907 = vmatpush1.msra.mxu0 0.0
        %908 = vmatprep.subr.mxu0 0.0
        %909 = vmatpush1.msra.mxu0 0.0
        %910 = vmatprep.subr.mxu0 0.0
        %911 = vmatpush1.msra.mxu0 0.0
        %912 = vmatprep.subr.mxu0 0.0
        %913 = vmatpush1.msra.mxu0 0.0
        %914 = vmatprep.subr.mxu0 0.0
        %915 = vmatpush1.msra.mxu0 0.0
        %916 = vmatprep.subr.mxu0 0.0
        %917 = vmatpush1.msra.mxu0 0.0
        %918 = vmatprep.subr.mxu0 0.0
        %919 = vmatpush1.msra.mxu0 0.0
        %920 = vmatprep.subr.mxu0 0.0
        %921 = vmatpush1.msra.mxu0 0.0
        %922 = vmatprep.subr.mxu0 0.0
        %923 = vmatpush1.msra.mxu0 0.0
        %924 = vmatprep.subr.mxu0 0.0
        %925 = vmatpush1.msra.mxu0 %v676
        %926 = vmatprep.subr.mxu0 0.0
        %927 = vmatpush2.msra.mxu0 0.0
        %928 = vmatprep.subr.mxu0 0.0
        %929 = vmatpush2.msra.mxu0 0.0
        %930 = vmatprep.subr.mxu0 0.0
        %931 = vmatpush2.msra.mxu0 0.0
        %932 = vmatprep.subr.mxu0 0.0
        %933 = vmatpush2.msra.mxu0 0.0
        %934 = vmatprep.subr.mxu0 0.0
        %935 = vmatpush2.msra.mxu0 0.0
        %936 = vmatprep.subr.mxu0 0.0
        %937 = vmatpush2.msra.mxu0 0.0
        %938 = vmatprep.subr.mxu0 0.0
        %939 = vmatpush2.msra.mxu0 0.0
        %940 = vmatprep.subr.mxu0 0.0
        %941 = vmatpush2.msra.mxu0 0.0
        %942 = vmatprep.subr.mxu0 0.0
        %943 = vmatpush2.msra.mxu0 0.0
        %944 = vmatprep.subr.mxu0 0.0
        %945 = vmatpush2.msra.mxu0 0.0
        %946 = vmatprep.subr.mxu0 0.0
        %947 = vmatpush2.msra.mxu0 0.0
        %948 = vmatprep.subr.mxu0 0.0
        %949 = vmatpush2.msra.mxu0 0.0
        %950 = vmatprep.subr.mxu0 0.0
        %951 = vmatpush2.msra.mxu0 0.0
        %952 = vmatprep.subr.mxu0 0.0
        %953 = vmatpush2.msra.mxu0 0.0
        %954 = vmatprep.subr.mxu0 0.0
        %955 = vmatpush2.msra.mxu0 0.0
        %956 = vmatprep.subr.mxu0 0.0
        %957 = vmatpush2.msra.mxu0 0.0
        %958 = vmatprep.mubr.f32.mxu0 0.0
        %959 = vmatmul.mubr.f32.gmra.mxu0 %v892
        %v960 = vpop.f32.mrf.mxu0
        %v961 = vadd.f32 0.0, %v960
        %v962 = vpop.f32.mrf.mxu0
        %963 = vdwg.mxu0
        %v964 = vrcp.pop %v961
        %v966 = vrot.slane %v964, 1
        %v967 = vrot.slane %v964, 2
        %v968 = vrot.slane %v964, 3
        %v969 = vrot.slane %v964, 4
        %v970 = vrot.slane %v964, 5
        %v971 = vrot.slane %v964, 6
        %v972 = vrot.slane %v964, 7
        %v981 = vmul.f32 %v820, %v964
        %v982 = vmul.f32 %v827, %v966
        %v983 = vmul.f32 %v834, %v967
        %v984 = vmul.f32 %v841, %v968
        %v985 = vmul.f32 %v848, %v969
        %v986 = vmul.f32 %v855, %v970
        %v987 = vmul.f32 %v862, %v971
        %v988 = vmul.f32 %v869, %v972
        %v989 = vld [vmem:[%s6] sm:$0x1]
        %v990 = vld [vmem:[%s6 + $0x1] sm:$0x1]
        %v991 = vld [vmem:[%s6 + $0x2] sm:$0x1]
        %v992 = vld [vmem:[%s5] sm:$0xff]
        %v993 = vld [vmem:[%s5 + $0x8] sm:$0xff]
        %v994 = vld [vmem:[%s5 + $0x10] sm:$0xff]
        %v995 = vld [vmem:[%s5 + $0x18] sm:$0xff]
        %v996 = vlaneseq
        %v997 = vshrl.u32 %v996, 7
        %v998 = vsub.s32 0, %v997
        %v999 = vrot.slane %v989, %v998
        %v1008 = vrot.slane %v982, 7
        %v1009 = vsel %vm878, %v1008, %v981
        %v1010 = vrot.slane %v983, 6
        %v1011 = vsel %vm880, %v1010, %v1009
        %v1012 = vrot.slane %v984, 5
        %v1013 = vsel %vm882, %v1012, %v1011
        %v1014 = vrot.slane %v985, 4
        %v1015 = vsel %vm884, %v1014, %v1013
        %v1016 = vrot.slane %v986, 3
        %v1017 = vsel %vm886, %v1016, %v1015
        %v1018 = vrot.slane %v987, 2
        %v1019 = vsel %vm888, %v1018, %v1017
        %v1020 = vrot.slane %v988, 1
        %v1021 = vsel %vm890, %v1020, %v1019
        %v1022 = vsel %vm291, %v1021, 0
        %1024 = vmatprep.subr.mxu0 0.0
        %1025 = vmatpush1.msra.mxu0 0.0
        %1026 = vmatprep.subr.mxu0 0.0
        %1027 = vmatpush1.msra.mxu0 0.0
        %1028 = vmatprep.subr.mxu0 0.0
        %1029 = vmatpush1.msra.mxu0 0.0
        %1030 = vmatprep.subr.mxu0 0.0
        %1031 = vmatpush1.msra.mxu0 0.0
        %1032 = vmatprep.subr.mxu0 0.0
        %1033 = vmatpush1.msra.mxu0 0.0
        %1034 = vmatprep.subr.mxu0 0.0
        %1035 = vmatpush1.msra.mxu0 0.0
        %1036 = vmatprep.subr.mxu0 0.0
        %1037 = vmatpush1.msra.mxu0 0.0
        %1038 = vmatprep.subr.mxu0 0.0
        %1039 = vmatpush1.msra.mxu0 0.0
        %1040 = vmatprep.subr.mxu0 0.0
        %1041 = vmatpush1.msra.mxu0 0.0
        %1042 = vmatprep.subr.mxu0 0.0
        %1043 = vmatpush1.msra.mxu0 0.0
        %1044 = vmatprep.subr.mxu0 0.0
        %1045 = vmatpush1.msra.mxu0 0.0
        %1046 = vmatprep.subr.mxu0 0.0
        %1047 = vmatpush1.msra.mxu0 0.0
        %1048 = vmatprep.subr.mxu0 0.0
        %1049 = vmatpush1.msra.mxu0 %v995
        %1050 = vmatprep.subr.mxu0 0.0
        %1051 = vmatpush1.msra.mxu0 %v994
        %1052 = vmatprep.subr.mxu0 0.0
        %1053 = vmatpush1.msra.mxu0 %v993
        %1054 = vmatprep.subr.mxu0 0.0
        %1055 = vmatpush1.msra.mxu0 %v992
        %1056 = vmatprep.subr.mxu0 0.0
        %1057 = vmatpush2.msra.mxu0 0.0
        %1058 = vmatprep.subr.mxu0 0.0
        %1059 = vmatpush2.msra.mxu0 0.0
        %1060 = vmatprep.subr.mxu0 0.0
        %1061 = vmatpush2.msra.mxu0 0.0
        %1062 = vmatprep.subr.mxu0 0.0
        %1063 = vmatpush2.msra.mxu0 0.0
        %1064 = vmatprep.subr.mxu0 0.0
        %1065 = vmatpush2.msra.mxu0 0.0
        %1066 = vmatprep.subr.mxu0 0.0
        %1067 = vmatpush2.msra.mxu0 0.0
        %1068 = vmatprep.subr.mxu0 0.0
        %1069 = vmatpush2.msra.mxu0 0.0
        %1070 = vmatprep.subr.mxu0 0.0
        %1071 = vmatpush2.msra.mxu0 0.0
        %1072 = vmatprep.subr.mxu0 0.0
        %1073 = vmatpush2.msra.mxu0 0.0
        %1074 = vmatprep.subr.mxu0 0.0
        %1075 = vmatpush2.msra.mxu0 0.0
        %1076 = vmatprep.subr.mxu0 0.0
        %1077 = vmatpush2.msra.mxu0 0.0
        %1078 = vmatprep.subr.mxu0 0.0
        %1079 = vmatpush2.msra.mxu0 0.0
        %1080 = vmatprep.subr.mxu0 0.0
        %1081 = vmatpush2.msra.mxu0 0.0
        %1082 = vmatprep.subr.mxu0 0.0
        %1083 = vmatpush2.msra.mxu0 0.0
        %1084 = vmatprep.subr.mxu0 0.0
        %1085 = vmatpush2.msra.mxu0 0.0
        %1086 = vmatprep.subr.mxu0 0.0
        %1087 = vmatpush2.msra.mxu0 0.0
        %1088 = vmatprep.mubr.f32.mxu0 0.0
        %1089 = vmatmul.mubr.f32.gmra.mxu0 %v1022
        %v1090 = vpop.f32.mrf.mxu0
        %v1091 = vadd.f32 %v999, %v1090
        %v1092 = vpop.f32.mrf.mxu0
        %1093 = vdwg.mxu0
        %v1094 = vsel %vm291, %v1091, 0.0
        %1095 = vadd.xlane.f32.xlu0 %v1094
        %v1096 = vpop.xlane.xlu0 %1095
        %v1097 = vrcp.pop 32.0
        %v1098 = vmul.f32 %v1096, %v1097
        %v1099 = vsub.f32 %v1091, %v1098
        %v1100 = vmul.f32 %v1099, %v1099
        %v1101 = vsel %vm291, %v1100, 0.0
        %1102 = vadd.xlane.f32.xlu0 %v1101
        %v1103 = vpop.xlane.xlu0 %1102
        %v1104 = vmul.f32 %v1103, %v1097
        %v1105 = vadd.f32 %v1104, 1e-05
        %v1106 = vrsqrt.pop %v1105
        %v1107 = vmul.f32 %v1099, %v1106
        %v1108 = vlaneseq
        %v1109 = vshrl.u32 %v1108, 7
        %v1110 = vsub.s32 0, %v1109
        %v1111 = vrot.slane %v990, %v1110
        %v1112 = vmul.f32 %v1107, %v1111
        %v1113 = vlaneseq
        %v1114 = vshrl.u32 %v1113, 7
        %v1115 = vsub.s32 0, %v1114
        %v1116 = vrot.slane %v991, %v1115
        %v1117 = vadd.f32 %v1112, %v1116
        %1118 = vst.msk [vmem:[%s272] sm:$0xff] %vm291, %v1117
        %s1119 = sand.u32 %s181, 1
        %s1120 = scalar_lea.sflag [#allocation3], %s1119
        %s1121 = sand.u32 %s181, 1
        %s1122 = smul.addr %s1121, 8
        %s1123 = scalar_lea.vmem [#allocation2], %s1122
        // Predicated region
        $region49: #{tpu_custom_call.1} parent=47 // pred_check
          %p1124 = pneg %p191
        $region50: #{tpu_custom_call.1} parent=47 // pred_check_branch
          %1126 = sbr.rel (%p1124) target = $region52
        $region51: #{tpu_custom_call.1} parent=47 // pred_region
          %s1128 = ssub.s32 128, 128
          %1129 = vsyncadd %s1120, %s1128
          %s1130 = smul.addr %s21, 128
          %s1131 = scalar_lea.hbm %s7, %s1130
          %s1133 = sshll.u32 %s1123, 4
          %s1134 = int_to_ptr.vmem [resolvable:$true] %s1133
          %1136 = dma.vmem_to_hbm [thread:$0]  %s1134, 128, %s1131, %s1120
        $region52: #{tpu_custom_call.1} parent=47 // pred_fallthru
          _
      $region48: #{tpu_custom_call.1} parent=5 // pred_fallthru
        _
      %p1137 = scmp.le.s32.totalorder 2, %s16
      // Predicated region
      $region53: #{tpu_custom_call.1} parent=5 // pred_check
        %p1138 = pneg %p1137
      $region54: #{tpu_custom_call.1} parent=5 // pred_check_branch
        %1140 = sbr.rel (%p1138) target = $region56
      $region55: #{tpu_custom_call.1} parent=5 // pred_region
        %s1141 = ssub.s32 %s16, 2
        // Predicated region
        $region57: #{tpu_custom_call.1} parent=55 // pred_check
          %p1142 = pneg %p197
        $region58: #{tpu_custom_call.1} parent=55 // pred_check_branch
          %1144 = sbr.rel (%p1142) target = $region60
        $region59: #{tpu_custom_call.1} parent=55 // pred_region
          %s1145 = sand.u32 %s182, 1
          %s1146 = scalar_lea.sflag [#allocation3], %s1145
          %s1147 = sand.u32 %s182, 1
          %s1148 = smul.addr %s1147, 8
          %s1149 = scalar_lea.vmem [#allocation2], %s1148
          %1150 = dma.done %s1146, 128
        $region60: #{tpu_custom_call.1} parent=55 // pred_fallthru
          _
      $region56: #{tpu_custom_call.1} parent=5 // pred_fallthru
        _
    $region6: #{tpu_custom_call.1} parent=1 // loop_footer
      %s20 = sadd.s32 1, %s16
    $region7: #{tpu_custom_call.1} parent=1 // loop_footer_branch
      %15 = sbr.rel target = $region3
    $region8: #{tpu_custom_call.1} parent=1 // loop_exit
      _
    %1151 = vsyncpa [#allocation3], 1
    %s1152 = scalar_lea.sflag [#allocation3], 1
    %1153 = vsyncpa %s1152, 1

</llo_original>
